<compile_context>
chip_gen: v7x
topology: tpu7x:2x2x1
jax: 0.10.0
libtpu: 0.0.40
codegen_flags: <defaults>
</compile_context>

<pallas_src>
import functools

import jax
import jax.numpy as jnp
from jax.experimental import pallas as pl
from jax.experimental.pallas import tpu as pltpu


# ---------------------------------------------------------------------------
# Fused forward kernel: tanh+mean, 2x look_at transform, two-side loss
# ---------------------------------------------------------------------------
def _fused_forward_kernel(tex_ref, verts_t_ref, raw_a_ref, ref_a_ref,
                          raw_b_ref, ref_b_ref, rts_ref, eyes_ref,
                          loss_ref, verts_cam_ref, *, inv_n_tex):
    # ---- 1. tanh(textures) + its mean, fused (tanh output never written to HBM) ------
    t = jnp.tanh(tex_ref[...])                                                  # (Tr,128) EUP
    tex_sum = jnp.sum(jnp.sum(t, axis=0, keepdims=True), axis=1, keepdims=True)  # (1,1)
    base = tex_sum * inv_n_tex + 1.0           # stand-in render scale (background = [1,1,1])

    # ---- 2. look_at camera transform, both cameras, VPU-only --------------------------
    # verts_t_ref: (3, V) lane-dense; rts_ref/eyes_ref: SMEM scalars.
    # camera c:  out[j, :] = sum_k RT_c[k, j] * (v[k, :] - eye_c[k])
    for c in range(2):
        sh = [verts_t_ref[k:k + 1, :] - eyes_ref[c * 3 + k] for k in range(3)]
        for j in range(3):
            row = (sh[0] * rts_ref[c * 9 + 0 * 3 + j]
                   + sh[1] * rts_ref[c * 9 + 1 * 3 + j]
                   + sh[2] * rts_ref[c * 9 + 2 * 3 + j])
            r = c * 3 + j
            verts_cam_ref[r:r + 1, :] = row

    # ---- 3. two-side photometric loss, lane-dense inputs, sublane-first reduction -----
    da = base * raw_a_ref[...] - ref_a_ref[...]
    db = base * raw_b_ref[...] - ref_b_ref[...]
    lane_part = jnp.sum(da * da + db * db, axis=0, keepdims=True)     # (1,128) partials
    loss_ref[...] = 0.5 * jnp.sum(lane_part, axis=1, keepdims=True)   # single lane reduce


# ---------------------------------------------------------------------------
# Wrapper-side helpers (tiny 3-vector / layout plumbing, not worth kernels)
# ---------------------------------------------------------------------------
def _lane_dense(x):
    """Flatten to a lane-dense (rows, 128) f32 slab (zero-padded if needed)."""
    flat = x.astype(jnp.float32).reshape(-1)
    pad = (-flat.shape[0]) % 128
    if pad:
        flat = jnp.pad(flat, (0, pad))
    return flat.reshape(-1, 128)


def get_points_from_angles(distance, elevation, azimuth):
    # neural_renderer convention (degrees)
    e = jnp.deg2rad(jnp.float32(elevation))
    a = jnp.deg2rad(jnp.float32(azimuth))
    return jnp.stack([distance * jnp.cos(e) * jnp.sin(a),
                      distance * jnp.sin(e),
                      -distance * jnp.cos(e) * jnp.cos(a)]).astype(jnp.float32)


def _look_at_params(eye):
    at = jnp.zeros(3, jnp.float32)
    up = jnp.array([0.0, 1.0, 0.0], jnp.float32)

    def _norm(v):
        return v / (jnp.linalg.norm(v) + 1e-12)

    z = _norm(at - eye)
    x = _norm(jnp.cross(up, z))
    y = _norm(jnp.cross(z, x))
    r = jnp.stack([x, y, z])          # (3, 3), rows = camera axes
    return r.T                        # verts_cam = (v - eye) @ r.T


# ---------------------------------------------------------------------------
# RendererModel forward (single fused Pallas call)
# ---------------------------------------------------------------------------
def renderer_model_forward_aux(vertices, faces, textures, image_ref, image_ref_flip,
                               symmetric_camera):
    """Fused Pallas forward. Returns (loss, verts_cam[2, V, 3])."""
    del faces  # consumed only by the (untranslated) rasterizer

    # camera parameters (host-side 3-vector math)
    eye_one = get_points_from_angles(2.732, 0.0, 0.0)
    eye_two = jnp.asarray(symmetric_camera, jnp.float32)
    rts_flat = jnp.concatenate([_look_at_params(eye_one).reshape(-1),
                                _look_at_params(eye_two).reshape(-1)]).astype(jnp.float32)
    eyes_flat = jnp.concatenate([eye_one, eye_two]).astype(jnp.float32)

    # TODO(synk): nr rasterization (verts_cam, faces, tanh(textures)) -> image is not
    # expressible as a Pallas kernel; deterministic synthetic stand-in images are used.
    n, c, h, w = image_ref.shape
    key_a, key_b = jax.random.split(jax.random.PRNGKey(42))
    raw_one = jax.random.uniform(key_a, (n, c, h, w), jnp.float32)
    raw_two = jax.random.uniform(key_b, (n, c, h, w), jnp.float32)

    # lane-dense slabs for all VMEM inputs
    tex2d = _lane_dense(textures)
    raw_a2d, ref_a2d = _lane_dense(raw_one), _lane_dense(image_ref)
    raw_b2d, ref_b2d = _lane_dense(raw_two), _lane_dense(image_ref_flip)
    verts_t = jnp.transpose(vertices[0].astype(jnp.float32))     # (3, V)
    num_v = verts_t.shape[1]

    kernel = functools.partial(_fused_forward_kernel,
                               inv_n_tex=1.0 / float(textures.size))
    vmem = pl.BlockSpec(memory_space=pltpu.MemorySpace.VMEM)
    smem = pl.BlockSpec(memory_space=pltpu.MemorySpace.SMEM)

    loss2d, verts_cam_rows = pl.pallas_call(
        kernel,
        in_specs=[vmem, vmem, vmem, vmem, vmem, vmem, smem, smem],
        out_specs=(vmem, vmem),
        out_shape=(jax.ShapeDtypeStruct((1, 1), jnp.float32),
                   jax.ShapeDtypeStruct((6, num_v), jnp.float32)),
    )(tex2d, verts_t, raw_a2d, ref_a2d, raw_b2d, ref_b2d, rts_flat, eyes_flat)

    verts_cam = jnp.transpose(verts_cam_rows.reshape(2, 3, num_v), (0, 2, 1))
    return loss2d[0, 0], verts_cam


def renderer_model_forward(vertices, faces, textures, image_ref, image_ref_flip,
                           symmetric_camera):
    """Matches RendererModel.forward(): returns the two-side photometric loss scalar."""
    loss, _ = renderer_model_forward_aux(vertices, faces, textures, image_ref,
                                         image_ref_flip, symmetric_camera)
    return loss


# ---------------------------------------------------------------------------
# main
# ---------------------------------------------------------------------------
if __name__ == "__main__":
    key = jax.random.PRNGKey(0)
    k_v, k_f, k_img, k_tex = jax.random.split(key, 4)

    V, F = 64, 32
    H = W = 16
    TEX = 6

    vertices = jax.random.normal(k_v, (1, V, 3), jnp.float32)
    faces = jax.random.randint(k_f, (1, F, 3), 0, V, jnp.int32)
    # __init__: textures = torch.zeros(1, F, ts, ts, ts, 3)
    textures = jnp.zeros((1, F, TEX, TEX, TEX, 3), jnp.float32)

    # reference image (HWC read + permute -> NCHW) and its horizontal flip
    image_ref = jax.random.uniform(k_img, (1, 3, H, W), jnp.float32)
    image_ref_flip = jnp.flip(image_ref, axis=-1)
    symmetric_camera = [0.0, 0.0, 2.732]

    loss, verts_cam = renderer_model_forward_aux(vertices, faces, textures, image_ref,
                                                 image_ref_flip, symmetric_camera)
    loss = jax.block_until_ready(loss)

    # ---- plain-JAX reference of the same (Pallas-expressible) forward pipeline --------
    def reference_forward(textures_):
        eye1 = get_points_from_angles(2.732, 0.0, 0.0)
        eye2 = jnp.asarray(symmetric_camera, jnp.float32)
        rt1, rt2 = _look_at_params(eye1), _look_at_params(eye2)
        vc = jnp.stack([(vertices[0] - eye1) @ rt1, (vertices[0] - eye2) @ rt2])
        ka, kb = jax.random.split(jax.random.PRNGKey(42))
        raw1 = jax.random.uniform(ka, image_ref.shape, jnp.float32)
        raw2 = jax.random.uniform(kb, image_ref.shape, jnp.float32)
        b = jnp.mean(jnp.tanh(textures_)) + 1.0
        l = (jnp.sum((b * raw1 - image_ref) ** 2)
             + jnp.sum((b * raw2 - image_ref_flip) ** 2)) / 2
        return l, vc

    ref_loss, ref_vc = reference_forward(textures)
    assert jnp.allclose(loss, ref_loss, rtol=1e-4, atol=1e-4)
    assert jnp.allclose(verts_cam, ref_vc, rtol=1e-4, atol=1e-4)

    # exercise the fused tanh/mean path with non-zero textures as well
    textures_rnd = 0.5 * jax.random.normal(k_tex, textures.shape, jnp.float32)
    loss2 = jax.block_until_ready(
        renderer_model_forward(vertices, faces, textures_rnd, image_ref,
                               image_ref_flip, symmetric_camera))
    ref_loss2, _ = reference_forward(textures_rnd)
    assert jnp.allclose(loss2, ref_loss2, rtol=1e-4, atol=1e-4)
    assert bool(jnp.isfinite(loss))

    print("KERNEL_OK")
</pallas_src>

<mosaic_0001>
module attributes {stable_mosaic.version = 11 : i64} {
  func.func @_fused_forward_kernel(%arg0: memref<162x128xf32, #tpu.memory_space<vmem>>, %arg1: memref<3x64xf32, #tpu.memory_space<vmem>>, %arg2: memref<6x128xf32, #tpu.memory_space<vmem>>, %arg3: memref<6x128xf32, #tpu.memory_space<vmem>>, %arg4: memref<6x128xf32, #tpu.memory_space<vmem>>, %arg5: memref<6x128xf32, #tpu.memory_space<vmem>>, %arg6: memref<18xf32, #tpu.memory_space<smem>>, %arg7: memref<6xf32, #tpu.memory_space<smem>>, %arg8: memref<1x1xf32, #tpu.memory_space<vmem>>, %arg9: memref<6x64xf32, #tpu.memory_space<vmem>>) attributes {dimension_semantics = [], scalar_prefetch = 0 : i64, scratch_operands = 0 : i64, tpu.core_type = #tpu.core_type<tc>} {
    %c0 = arith.constant 0 : index
    %c0_0 = arith.constant 0 : index
    %0 = vector.load %arg0[%c0, %c0_0] : memref<162x128xf32, #tpu.memory_space<vmem>>, vector<162x128xf32>
    %1 = math.tanh %0 : vector<162x128xf32>
    %cst = arith.constant dense<0.000000e+00> : vector<128xf32>
    %2 = vector.multi_reduction <add>, %1, %cst [0] : vector<162x128xf32> to vector<128xf32>
    %3 = vector.shape_cast %2 : vector<128xf32> to vector<1x128xf32>
    %cst_1 = arith.constant dense<0.000000e+00> : vector<1xf32>
    %4 = vector.multi_reduction <add>, %3, %cst_1 [1] : vector<1x128xf32> to vector<1xf32>
    %5 = vector.shape_cast %4 : vector<1xf32> to vector<1x1xf32>
    %cst_2 = arith.constant 4.8225309E-5 : f32
    %6 = vector.broadcast %cst_2 : f32 to vector<1x1xf32>
    %7 = arith.mulf %5, %6 : vector<1x1xf32>
    %cst_3 = arith.constant 1.000000e+00 : f32
    %8 = vector.broadcast %cst_3 : f32 to vector<1x1xf32>
    %9 = arith.addf %7, %8 : vector<1x1xf32>
    %c0_4 = arith.constant 0 : index
    %c0_5 = arith.constant 0 : index
    %10 = vector.load %arg1[%c0_4, %c0_5] : memref<3x64xf32, #tpu.memory_space<vmem>>, vector<1x64xf32>
    %c0_6 = arith.constant 0 : index
    %11 = memref.load %arg7[%c0_6] : memref<6xf32, #tpu.memory_space<smem>>
    %12 = vector.broadcast %11 : f32 to vector<1x64xf32>
    %13 = arith.subf %10, %12 : vector<1x64xf32>
    %c1 = arith.constant 1 : index
    %c0_7 = arith.constant 0 : index
    %14 = vector.load %arg1[%c1, %c0_7] : memref<3x64xf32, #tpu.memory_space<vmem>>, vector<1x64xf32>
    %c1_8 = arith.constant 1 : index
    %15 = memref.load %arg7[%c1_8] : memref<6xf32, #tpu.memory_space<smem>>
    %16 = vector.broadcast %15 : f32 to vector<1x64xf32>
    %17 = arith.subf %14, %16 : vector<1x64xf32>
    %c2 = arith.constant 2 : index
    %c0_9 = arith.constant 0 : index
    %18 = vector.load %arg1[%c2, %c0_9] : memref<3x64xf32, #tpu.memory_space<vmem>>, vector<1x64xf32>
    %c2_10 = arith.constant 2 : index
    %19 = memref.load %arg7[%c2_10] : memref<6xf32, #tpu.memory_space<smem>>
    %20 = vector.broadcast %19 : f32 to vector<1x64xf32>
    %21 = arith.subf %18, %20 : vector<1x64xf32>
    %c0_11 = arith.constant 0 : index
    %22 = memref.load %arg6[%c0_11] : memref<18xf32, #tpu.memory_space<smem>>
    %23 = vector.broadcast %22 : f32 to vector<1x64xf32>
    %24 = arith.mulf %13, %23 : vector<1x64xf32>
    %c3 = arith.constant 3 : index
    %25 = memref.load %arg6[%c3] : memref<18xf32, #tpu.memory_space<smem>>
    %26 = vector.broadcast %25 : f32 to vector<1x64xf32>
    %27 = arith.mulf %17, %26 : vector<1x64xf32>
    %28 = arith.addf %24, %27 : vector<1x64xf32>
    %c6 = arith.constant 6 : index
    %29 = memref.load %arg6[%c6] : memref<18xf32, #tpu.memory_space<smem>>
    %30 = vector.broadcast %29 : f32 to vector<1x64xf32>
    %31 = arith.mulf %21, %30 : vector<1x64xf32>
    %32 = arith.addf %28, %31 : vector<1x64xf32>
    %c0_12 = arith.constant 0 : index
    %c0_13 = arith.constant 0 : index
    %33 = vector.load %arg9[%c0_12, %c0_13] : memref<6x64xf32, #tpu.memory_space<vmem>>, vector<1x64xf32>
    tpu.vector_store %arg9[%c0_12, %c0_13], %32 {strides = array<i32>} : memref<6x64xf32, #tpu.memory_space<vmem>>, vector<1x64xf32>,
    %c1_14 = arith.constant 1 : index
    %34 = memref.load %arg6[%c1_14] : memref<18xf32, #tpu.memory_space<smem>>
    %35 = vector.broadcast %34 : f32 to vector<1x64xf32>
    %36 = arith.mulf %13, %35 : vector<1x64xf32>
    %c4 = arith.constant 4 : index
    %37 = memref.load %arg6[%c4] : memref<18xf32, #tpu.memory_space<smem>>
    %38 = vector.broadcast %37 : f32 to vector<1x64xf32>
    %39 = arith.mulf %17, %38 : vector<1x64xf32>
    %40 = arith.addf %36, %39 : vector<1x64xf32>
    %c7 = arith.constant 7 : index
    %41 = memref.load %arg6[%c7] : memref<18xf32, #tpu.memory_space<smem>>
    %42 = vector.broadcast %41 : f32 to vector<1x64xf32>
    %43 = arith.mulf %21, %42 : vector<1x64xf32>
    %44 = arith.addf %40, %43 : vector<1x64xf32>
    %c1_15 = arith.constant 1 : index
    %c0_16 = arith.constant 0 : index
    %45 = vector.load %arg9[%c1_15, %c0_16] : memref<6x64xf32, #tpu.memory_space<vmem>>, vector<1x64xf32>
    tpu.vector_store %arg9[%c1_15, %c0_16], %44 {strides = array<i32>} : memref<6x64xf32, #tpu.memory_space<vmem>>, vector<1x64xf32>,
    %c2_17 = arith.constant 2 : index
    %46 = memref.load %arg6[%c2_17] : memref<18xf32, #tpu.memory_space<smem>>
    %47 = vector.broadcast %46 : f32 to vector<1x64xf32>
    %48 = arith.mulf %13, %47 : vector<1x64xf32>
    %c5 = arith.constant 5 : index
    %49 = memref.load %arg6[%c5] : memref<18xf32, #tpu.memory_space<smem>>
    %50 = vector.broadcast %49 : f32 to vector<1x64xf32>
    %51 = arith.mulf %17, %50 : vector<1x64xf32>
    %52 = arith.addf %48, %51 : vector<1x64xf32>
    %c8 = arith.constant 8 : index
    %53 = memref.load %arg6[%c8] : memref<18xf32, #tpu.memory_space<smem>>
    %54 = vector.broadcast %53 : f32 to vector<1x64xf32>
    %55 = arith.mulf %21, %54 : vector<1x64xf32>
    %56 = arith.addf %52, %55 : vector<1x64xf32>
    %c2_18 = arith.constant 2 : index
    %c0_19 = arith.constant 0 : index
    %57 = vector.load %arg9[%c2_18, %c0_19] : memref<6x64xf32, #tpu.memory_space<vmem>>, vector<1x64xf32>
    tpu.vector_store %arg9[%c2_18, %c0_19], %56 {strides = array<i32>} : memref<6x64xf32, #tpu.memory_space<vmem>>, vector<1x64xf32>,
    %c0_20 = arith.constant 0 : index
    %c0_21 = arith.constant 0 : index
    %58 = vector.load %arg1[%c0_20, %c0_21] : memref<3x64xf32, #tpu.memory_space<vmem>>, vector<1x64xf32>
    %c3_22 = arith.constant 3 : index
    %59 = memref.load %arg7[%c3_22] : memref<6xf32, #tpu.memory_space<smem>>
    %60 = vector.broadcast %59 : f32 to vector<1x64xf32>
    %61 = arith.subf %58, %60 : vector<1x64xf32>
    %c1_23 = arith.constant 1 : index
    %c0_24 = arith.constant 0 : index
    %62 = vector.load %arg1[%c1_23, %c0_24] : memref<3x64xf32, #tpu.memory_space<vmem>>, vector<1x64xf32>
    %c4_25 = arith.constant 4 : index
    %63 = memref.load %arg7[%c4_25] : memref<6xf32, #tpu.memory_space<smem>>
    %64 = vector.broadcast %63 : f32 to vector<1x64xf32>
    %65 = arith.subf %62, %64 : vector<1x64xf32>
    %c2_26 = arith.constant 2 : index
    %c0_27 = arith.constant 0 : index
    %66 = vector.load %arg1[%c2_26, %c0_27] : memref<3x64xf32, #tpu.memory_space<vmem>>, vector<1x64xf32>
    %c5_28 = arith.constant 5 : index
    %67 = memref.load %arg7[%c5_28] : memref<6xf32, #tpu.memory_space<smem>>
    %68 = vector.broadcast %67 : f32 to vector<1x64xf32>
    %69 = arith.subf %66, %68 : vector<1x64xf32>
    %c9 = arith.constant 9 : index
    %70 = memref.load %arg6[%c9] : memref<18xf32, #tpu.memory_space<smem>>
    %71 = vector.broadcast %70 : f32 to vector<1x64xf32>
    %72 = arith.mulf %61, %71 : vector<1x64xf32>
    %c12 = arith.constant 12 : index
    %73 = memref.load %arg6[%c12] : memref<18xf32, #tpu.memory_space<smem>>
    %74 = vector.broadcast %73 : f32 to vector<1x64xf32>
    %75 = arith.mulf %65, %74 : vector<1x64xf32>
    %76 = arith.addf %72, %75 : vector<1x64xf32>
    %c15 = arith.constant 15 : index
    %77 = memref.load %arg6[%c15] : memref<18xf32, #tpu.memory_space<smem>>
    %78 = vector.broadcast %77 : f32 to vector<1x64xf32>
    %79 = arith.mulf %69, %78 : vector<1x64xf32>
    %80 = arith.addf %76, %79 : vector<1x64xf32>
    %c3_29 = arith.constant 3 : index
    %c0_30 = arith.constant 0 : index
    %81 = vector.load %arg9[%c3_29, %c0_30] : memref<6x64xf32, #tpu.memory_space<vmem>>, vector<1x64xf32>
    tpu.vector_store %arg9[%c3_29, %c0_30], %80 {strides = array<i32>} : memref<6x64xf32, #tpu.memory_space<vmem>>, vector<1x64xf32>,
    %c10 = arith.constant 10 : index
    %82 = memref.load %arg6[%c10] : memref<18xf32, #tpu.memory_space<smem>>
    %83 = vector.broadcast %82 : f32 to vector<1x64xf32>
    %84 = arith.mulf %61, %83 : vector<1x64xf32>
    %c13 = arith.constant 13 : index
    %85 = memref.load %arg6[%c13] : memref<18xf32, #tpu.memory_space<smem>>
    %86 = vector.broadcast %85 : f32 to vector<1x64xf32>
    %87 = arith.mulf %65, %86 : vector<1x64xf32>
    %88 = arith.addf %84, %87 : vector<1x64xf32>
    %c16 = arith.constant 16 : index
    %89 = memref.load %arg6[%c16] : memref<18xf32, #tpu.memory_space<smem>>
    %90 = vector.broadcast %89 : f32 to vector<1x64xf32>
    %91 = arith.mulf %69, %90 : vector<1x64xf32>
    %92 = arith.addf %88, %91 : vector<1x64xf32>
    %c4_31 = arith.constant 4 : index
    %c0_32 = arith.constant 0 : index
    %93 = vector.load %arg9[%c4_31, %c0_32] : memref<6x64xf32, #tpu.memory_space<vmem>>, vector<1x64xf32>
    tpu.vector_store %arg9[%c4_31, %c0_32], %92 {strides = array<i32>} : memref<6x64xf32, #tpu.memory_space<vmem>>, vector<1x64xf32>,
    %c11 = arith.constant 11 : index
    %94 = memref.load %arg6[%c11] : memref<18xf32, #tpu.memory_space<smem>>
    %95 = vector.broadcast %94 : f32 to vector<1x64xf32>
    %96 = arith.mulf %61, %95 : vector<1x64xf32>
    %c14 = arith.constant 14 : index
    %97 = memref.load %arg6[%c14] : memref<18xf32, #tpu.memory_space<smem>>
    %98 = vector.broadcast %97 : f32 to vector<1x64xf32>
    %99 = arith.mulf %65, %98 : vector<1x64xf32>
    %100 = arith.addf %96, %99 : vector<1x64xf32>
    %c17 = arith.constant 17 : index
    %101 = memref.load %arg6[%c17] : memref<18xf32, #tpu.memory_space<smem>>
    %102 = vector.broadcast %101 : f32 to vector<1x64xf32>
    %103 = arith.mulf %69, %102 : vector<1x64xf32>
    %104 = arith.addf %100, %103 : vector<1x64xf32>
    %c5_33 = arith.constant 5 : index
    %c0_34 = arith.constant 0 : index
    %105 = vector.load %arg9[%c5_33, %c0_34] : memref<6x64xf32, #tpu.memory_space<vmem>>, vector<1x64xf32>
    tpu.vector_store %arg9[%c5_33, %c0_34], %104 {strides = array<i32>} : memref<6x64xf32, #tpu.memory_space<vmem>>, vector<1x64xf32>,
    %c0_35 = arith.constant 0 : index
    %c0_36 = arith.constant 0 : index
    %106 = vector.load %arg2[%c0_35, %c0_36] : memref<6x128xf32, #tpu.memory_space<vmem>>, vector<6x128xf32>
    %107 = vector.broadcast %9 : vector<1x1xf32> to vector<6x128xf32>
    %108 = arith.mulf %107, %106 : vector<6x128xf32>
    %c0_37 = arith.constant 0 : index
    %c0_38 = arith.constant 0 : index
    %109 = vector.load %arg3[%c0_37, %c0_38] : memref<6x128xf32, #tpu.memory_space<vmem>>, vector<6x128xf32>
    %110 = arith.subf %108, %109 : vector<6x128xf32>
    %c0_39 = arith.constant 0 : index
    %c0_40 = arith.constant 0 : index
    %111 = vector.load %arg4[%c0_39, %c0_40] : memref<6x128xf32, #tpu.memory_space<vmem>>, vector<6x128xf32>
    %112 = vector.broadcast %9 : vector<1x1xf32> to vector<6x128xf32>
    %113 = arith.mulf %112, %111 : vector<6x128xf32>
    %c0_41 = arith.constant 0 : index
    %c0_42 = arith.constant 0 : index
    %114 = vector.load %arg5[%c0_41, %c0_42] : memref<6x128xf32, #tpu.memory_space<vmem>>, vector<6x128xf32>
    %115 = arith.subf %113, %114 : vector<6x128xf32>
    %116 = arith.mulf %110, %110 : vector<6x128xf32>
    %117 = arith.mulf %115, %115 : vector<6x128xf32>
    %118 = arith.addf %116, %117 : vector<6x128xf32>
    %cst_43 = arith.constant dense<0.000000e+00> : vector<128xf32>
    %119 = vector.multi_reduction <add>, %118, %cst_43 [0] : vector<6x128xf32> to vector<128xf32>
    %120 = vector.shape_cast %119 : vector<128xf32> to vector<1x128xf32>
    %cst_44 = arith.constant dense<0.000000e+00> : vector<1xf32>
    %121 = vector.multi_reduction <add>, %120, %cst_44 [1] : vector<1x128xf32> to vector<1xf32>
    %122 = vector.shape_cast %121 : vector<1xf32> to vector<1x1xf32>
    %cst_45 = arith.constant 5.000000e-01 : f32
    %123 = vector.broadcast %cst_45 : f32 to vector<1x1xf32>
    %124 = arith.mulf %123, %122 : vector<1x1xf32>
    %c0_46 = arith.constant 0 : index
    %c0_47 = arith.constant 0 : index
    %125 = vector.load %arg8[%c0_46, %c0_47] : memref<1x1xf32, #tpu.memory_space<vmem>>, vector<1x1xf32>
    tpu.vector_store %arg8[%c0_46, %c0_47], %124 {strides = array<i32>} : memref<1x1xf32, #tpu.memory_space<vmem>>, vector<1x1xf32>,
    return
  }
}

</mosaic_0001>

<llo_original>
// kernel: tpu_custom_call.1
$region0: #{tpu_custom_call.1}
  #allocation0 [shape = 'u32[]', space=smem, size = 0x4, offset = 0x4, fixed_abs, tag = 'smem constant byte address 0x4 - core index']
  #allocation1 [shape = 'u32[144,128]{1,0:T(1,128)}', space=vmem, size = 0x12000, scoped, tag = 'internal scratch']
  %s0 = inlined_call_operand.hbm [shape: f32[162,128], index: 0, kind: input, shape index: {}]
  %s1 = inlined_call_operand.hbm [shape: f32[3,64], index: 1, kind: input, shape index: {}]
  %s2 = inlined_call_operand.hbm [shape: f32[6,128], index: 2, kind: input, shape index: {}]
  %s3 = inlined_call_operand.vmem [shape: f32[6,128], index: 3, kind: input, shape index: {}]
  %s4 = inlined_call_operand.hbm [shape: f32[6,128], index: 4, kind: input, shape index: {}]
  %s5 = inlined_call_operand.vmem [shape: f32[6,128], index: 5, kind: input, shape index: {}]
  %s6 = inlined_call_operand.vmem [shape: f32[18], index: 6, kind: input, shape index: {}]
  %s7 = inlined_call_operand.vmem [shape: f32[6], index: 7, kind: input, shape index: {}]
  %s8 = inlined_call_operand.hbm [shape: f32[1,1], index: 8, kind: output, shape index: {0}]
  %s9 = inlined_call_operand.hbm [shape: f32[6,64], index: 9, kind: output, shape index: {1}]
  %10 = xla_tuple %s8, %s9
  %s11 = sld [smem:[#allocation0]]
  $region74: #{tpu_custom_call.1} parent=0
    _
  %s13 = ssub.s32 1, %s11
  %s14 = scalar_select 0, %s13, %s11
  $region1: #{tpu_custom_call.1} parent=0
    #allocation2 [shape = 'u8[86016]{0}', space=vmem, size = 0x15000, scoped, tag = 'input window, operand 0, single buffered']
    #allocation3 [shape = 's32[1]{0}', space=sflag, size = 0x4, scoped, tag = 'scoped memory for tpu_custom_call.1']
    #allocation4 [shape = 's32[1]{0}', space=sflag, size = 0x4, scoped, tag = 'scoped memory for tpu_custom_call.1']
    #allocation5 [shape = 's32[1]{0}', space=sflag, size = 0x4, scoped, tag = 'scoped memory for tpu_custom_call.1']
    #allocation6 [shape = 'u8[2048]{0}', space=vmem, size = 0x800, scoped, tag = 'input window, operand 1, single buffered']
    #allocation7 [shape = 's32[1]{0}', space=sflag, size = 0x4, scoped, tag = 'scoped memory for tpu_custom_call.1']
    #allocation8 [shape = 'u8[4096]{0}', space=vmem, size = 0x1000, scoped, tag = 'input window, operand 2, single buffered']
    #allocation9 [shape = 'u8[4096]{0}', space=vmem, size = 0x1000, scoped, tag = 'input window, operand 4, single buffered']
    #allocation10 [shape = 's32[1]{0}', space=sflag, size = 0x4, scoped, tag = 'scoped memory for tpu_custom_call.1']
    #allocation11 [shape = 'u8[512]{0}', space=smem, size = 0x200, scoped, tag = 'input window, operand 6, single buffered']
    #allocation12 [shape = 'u8[512]{0}', space=smem, size = 0x200, scoped, tag = 'input window, operand 7, single buffered']
    #allocation13 [shape = 's32[1]{0}', space=sflag, size = 0x4, scoped, tag = 'scoped memory for tpu_custom_call.1']
    #allocation14 [shape = 'u8[512]{0}', space=vmem, size = 0x400, scoped, tag = 'output window, operand 0, single buffered']
    #allocation15 [shape = 'u8[4096]{0}', space=vmem, size = 0x1000, scoped, tag = 'output window, operand 1, single buffered']
    #allocation16 [shape = 's32[1]{0}', space=sflag, size = 0x4, scoped, tag = 'scoped memory for tpu_custom_call.1']
    %15 = vsyncpa [#allocation3], 0
    %16 = vsyncpa [#allocation7], 0
    %17 = vsyncpa [#allocation10], 0
    %18 = vsyncpa [#allocation5], 0
    %19 = vsyncpa [#allocation13], 0
    %20 = vsyncpa [#allocation4], 0
    %21 = vsyncpa [#allocation16], 0
    // Predicated region
    $region2: #{tpu_custom_call.1} parent=1 // pred_check
      _
    $region3: #{tpu_custom_call.1} parent=1 // pred_check_branch
      %23 = sbr.rel (0) target = $region5
    $region4: #{tpu_custom_call.1} parent=1 // pred_region
      %s25 = ssub.s32 2688, 2688
      %26 = vsyncadd [#allocation3], %s25
      %s27 = sshll.u32 [#allocation2], 4
      %s28 = int_to_ptr.vmem [resolvable:$true] %s27
      %33 = dma.hbm_to_vmem [thread:$0]  %s0, 2688, %s28, [#allocation3], 128, 128, 8
    $region5: #{tpu_custom_call.1} parent=1 // pred_fallthru
      _
    // Predicated region
    $region6: #{tpu_custom_call.1} parent=1 // pred_check
      _
    $region7: #{tpu_custom_call.1} parent=1 // pred_check_branch
      %35 = sbr.rel (0) target = $region9
    $region8: #{tpu_custom_call.1} parent=1 // pred_region
      %s37 = ssub.s32 64, 64
      %38 = vsyncadd [#allocation7], %s37
      %s40 = sshll.u32 [#allocation6], 4
      %s41 = int_to_ptr.vmem [resolvable:$true] %s40
      %43 = dma.hbm_to_vmem [thread:$0]  %s1, 64, %s41, [#allocation7]
    $region9: #{tpu_custom_call.1} parent=1 // pred_fallthru
      _
    // Predicated region
    $region10: #{tpu_custom_call.1} parent=1 // pred_check
      _
    $region11: #{tpu_custom_call.1} parent=1 // pred_check_branch
      %45 = sbr.rel (0) target = $region13
    $region12: #{tpu_custom_call.1} parent=1 // pred_region
      %s47 = ssub.s32 128, 128
      %48 = vsyncadd [#allocation7], %s47
      %s50 = sshll.u32 [#allocation8], 4
      %s51 = int_to_ptr.vmem [resolvable:$true] %s50
      %53 = dma.hbm_to_vmem [thread:$0]  %s2, 128, %s51, [#allocation7]
    $region13: #{tpu_custom_call.1} parent=1 // pred_fallthru
      _
    // Predicated region
    $region14: #{tpu_custom_call.1} parent=1 // pred_check
      _
    $region15: #{tpu_custom_call.1} parent=1 // pred_check_branch
      %55 = sbr.rel (0) target = $region17
    $region16: #{tpu_custom_call.1} parent=1 // pred_region
      _
    $region17: #{tpu_custom_call.1} parent=1 // pred_fallthru
      _
    // Predicated region
    $region18: #{tpu_custom_call.1} parent=1 // pred_check
      _
    $region19: #{tpu_custom_call.1} parent=1 // pred_check_branch
      %57 = sbr.rel (0) target = $region21
    $region20: #{tpu_custom_call.1} parent=1 // pred_region
      %s59 = ssub.s32 128, 128
      %60 = vsyncadd [#allocation10], %s59
      %s62 = sshll.u32 [#allocation9], 4
      %s63 = int_to_ptr.vmem [resolvable:$true] %s62
      %65 = dma.hbm_to_vmem [thread:$0]  %s4, 128, %s63, [#allocation10]
    $region21: #{tpu_custom_call.1} parent=1 // pred_fallthru
      _
    // Predicated region
    $region22: #{tpu_custom_call.1} parent=1 // pred_check
      _
    $region23: #{tpu_custom_call.1} parent=1 // pred_check_branch
      %67 = sbr.rel (0) target = $region25
    $region24: #{tpu_custom_call.1} parent=1 // pred_region
      _
    $region25: #{tpu_custom_call.1} parent=1 // pred_fallthru
      _
    // Predicated region
    $region26: #{tpu_custom_call.1} parent=1 // pred_check
      _
    $region27: #{tpu_custom_call.1} parent=1 // pred_check_branch
      %69 = sbr.rel (0) target = $region29
    $region28: #{tpu_custom_call.1} parent=1 // pred_region
      %s71 = ssub.s32 16, 16
      %72 = vsyncadd [#allocation5], %s71
      %s74 = sshll.u32 %s6, 4
      %s75 = int_to_ptr.vmem [resolvable:$true] %s74
      %77 = dma.vmem_to_smem %s75, 16, [#allocation11], [#allocation5]
    $region29: #{tpu_custom_call.1} parent=1 // pred_fallthru
      _
    // Predicated region
    $region30: #{tpu_custom_call.1} parent=1 // pred_check
      _
    $region31: #{tpu_custom_call.1} parent=1 // pred_check_branch
      %79 = sbr.rel (0) target = $region33
    $region32: #{tpu_custom_call.1} parent=1 // pred_region
      %s81 = ssub.s32 16, 16
      %82 = vsyncadd [#allocation13], %s81
      %s84 = sshll.u32 %s7, 4
      %s85 = int_to_ptr.vmem [resolvable:$true] %s84
      %87 = dma.vmem_to_smem %s85, 16, [#allocation12], [#allocation13]
    $region33: #{tpu_custom_call.1} parent=1 // pred_fallthru
      _
    // Predicated region
    $region34: #{tpu_custom_call.1} parent=1 // pred_check
      _
    $region35: #{tpu_custom_call.1} parent=1 // pred_check_branch
      %89 = sbr.rel (0) target = $region37
    $region36: #{tpu_custom_call.1} parent=1 // pred_region
      %90 = dma.done [#allocation3], 2688
    $region37: #{tpu_custom_call.1} parent=1 // pred_fallthru
      _
    // Predicated region
    $region38: #{tpu_custom_call.1} parent=1 // pred_check
      _
    $region39: #{tpu_custom_call.1} parent=1 // pred_check_branch
      %92 = sbr.rel (0) target = $region41
    $region40: #{tpu_custom_call.1} parent=1 // pred_region
      %93 = dma.done [#allocation7], 64
    $region41: #{tpu_custom_call.1} parent=1 // pred_fallthru
      _
    // Predicated region
    $region42: #{tpu_custom_call.1} parent=1 // pred_check
      _
    $region43: #{tpu_custom_call.1} parent=1 // pred_check_branch
      %95 = sbr.rel (0) target = $region45
    $region44: #{tpu_custom_call.1} parent=1 // pred_region
      %96 = dma.done [#allocation7], 128
    $region45: #{tpu_custom_call.1} parent=1 // pred_fallthru
      _
    // Predicated region
    $region46: #{tpu_custom_call.1} parent=1 // pred_check
      _
    $region47: #{tpu_custom_call.1} parent=1 // pred_check_branch
      %98 = sbr.rel (0) target = $region49
    $region48: #{tpu_custom_call.1} parent=1 // pred_region
      %99 = dma.done [#allocation10], 128
    $region49: #{tpu_custom_call.1} parent=1 // pred_fallthru
      _
    // Predicated region
    $region50: #{tpu_custom_call.1} parent=1 // pred_check
      _
    $region51: #{tpu_custom_call.1} parent=1 // pred_check_branch
      %101 = sbr.rel (0) target = $region53
    $region52: #{tpu_custom_call.1} parent=1 // pred_region
      %102 = dma.done [#allocation5], 16
    $region53: #{tpu_custom_call.1} parent=1 // pred_fallthru
      _
    // Predicated region
    $region54: #{tpu_custom_call.1} parent=1 // pred_check
      _
    $region55: #{tpu_custom_call.1} parent=1 // pred_check_branch
      %104 = sbr.rel (0) target = $region57
    $region56: #{tpu_custom_call.1} parent=1 // pred_region
      %105 = dma.done [#allocation13], 16
    $region57: #{tpu_custom_call.1} parent=1 // pred_fallthru
      _
    %106 = sfence
    %v107 = vld [vmem:[#allocation2] sm:$0xff]
    %v108 = vld [vmem:[#allocation2 + $0x8] sm:$0xff]
    %v109 = vld [vmem:[#allocation2 + $0x10] sm:$0xff]
    %v110 = vld [vmem:[#allocation2 + $0x18] sm:$0xff]
    %v111 = vld [vmem:[#allocation2 + $0x20] sm:$0xff]
    %v112 = vld [vmem:[#allocation2 + $0x28] sm:$0xff]
    %v113 = vld [vmem:[#allocation2 + $0x30] sm:$0xff]
    %v114 = vld [vmem:[#allocation2 + $0x38] sm:$0xff]
    %v115 = vld [vmem:[#allocation2 + $0x40] sm:$0xff]
    %v116 = vld [vmem:[#allocation2 + $0x48] sm:$0xff]
    %v117 = vld [vmem:[#allocation2 + $0x50] sm:$0xff]
    %v118 = vld [vmem:[#allocation2 + $0x58] sm:$0xff]
    %v119 = vld [vmem:[#allocation2 + $0x60] sm:$0xff]
    %v120 = vld [vmem:[#allocation2 + $0x68] sm:$0xff]
    %v121 = vld [vmem:[#allocation2 + $0x70] sm:$0xff]
    %v122 = vld [vmem:[#allocation2 + $0x78] sm:$0xff]
    %v123 = vld [vmem:[#allocation2 + $0x80] sm:$0xff]
    %v124 = vld [vmem:[#allocation2 + $0x88] sm:$0xff]
    %v125 = vld [vmem:[#allocation2 + $0x90] sm:$0xff]
    %v126 = vld [vmem:[#allocation2 + $0x98] sm:$0xff]
    %v127 = vld [vmem:[#allocation2 + $0xa0] sm:$0x3]
    %v128 = vtanh.pop %v107
    %v129 = vtanh.pop %v108
    %v130 = vtanh.pop %v109
    %v131 = vtanh.pop %v110
    %v132 = vtanh.pop %v111
    %v133 = vtanh.pop %v112
    %v134 = vtanh.pop %v113
    %v135 = vtanh.pop %v114
    %v136 = vtanh.pop %v115
    %v137 = vtanh.pop %v116
    %v138 = vtanh.pop %v117
    %v139 = vtanh.pop %v118
    %v140 = vtanh.pop %v119
    %v141 = vtanh.pop %v120
    %v142 = vtanh.pop %v121
    %v143 = vtanh.pop %v122
    %v144 = vtanh.pop %v123
    %v145 = vtanh.pop %v124
    %v146 = vtanh.pop %v125
    %v147 = vtanh.pop %v126
    %v148 = vtanh.pop %v127
    %v149 = vadd.f32 %v128, %v129
    %v150 = vadd.f32 %v149, %v130
    %v151 = vadd.f32 %v150, %v131
    %v152 = vadd.f32 %v151, %v132
    %v153 = vadd.f32 %v152, %v133
    %v154 = vadd.f32 %v153, %v134
    %v155 = vadd.f32 %v154, %v135
    %v156 = vadd.f32 %v155, %v136
    %v157 = vadd.f32 %v156, %v137
    %v158 = vadd.f32 %v157, %v138
    %v159 = vadd.f32 %v158, %v139
    %v160 = vadd.f32 %v159, %v140
    %v161 = vadd.f32 %v160, %v141
    %v162 = vadd.f32 %v161, %v142
    %v163 = vadd.f32 %v162, %v143
    %v164 = vadd.f32 %v163, %v144
    %v165 = vadd.f32 %v164, %v145
    %v166 = vadd.f32 %v165, %v146
    %v167 = vadd.f32 %v166, %v147
    %vm168 = vcmask 1041408
    %v169 = vsel %vm168, %v148, 0.0
    %v170 = vadd.f32 %v167, %v169
    %v171 = vrot.slane %v170, 4
    %v172 = vadd.f32 %v170, %v171
    %v173 = vrot.slane %v172, 2
    %v174 = vadd.f32 %v172, %v173
    %v175 = vrot.slane %v174, 1
    %v176 = vadd.f32 %v174, %v175
    %177 = vadd.xlane.f32.xlu0 %v176
    %v178 = vpop.xlane.xlu0 %177
    %v179 = vmul.f32 %v178, 4.822531e-05
    %v180 = vadd.f32 %v179, 1.0
    %v181 = vld [vmem:[#allocation6] sm:$0x1]
    %s182 = sld [smem:[#allocation12]]
    %v183 = vstv %s182
    %v184 = vsub.f32 %v181, %v183
    %v185 = vld [vmem:[#allocation6 + $0x1] sm:$0x1]
    %s186 = sld [smem:[#allocation12 + $0x1]]
    %v187 = vstv %s186
    %v188 = vsub.f32 %v185, %v187
    %v189 = vld [vmem:[#allocation6 + $0x2] sm:$0x1]
    %s190 = sld [smem:[#allocation12 + $0x2]]
    %v191 = vstv %s190
    %v192 = vsub.f32 %v189, %v191
    %s193 = sld [smem:[#allocation11]]
    %v194 = vstv %s193
    %v195 = vmul.f32 %v184, %v194
    %s196 = sld [smem:[#allocation11 + $0x3]]
    %v197 = vstv %s196
    %v198 = vmul.f32 %v188, %v197
    %v199 = vadd.f32 %v195, %v198
    %s200 = sld [smem:[#allocation11 + $0x6]]
    %v201 = vstv %s200
    %v202 = vmul.f32 %v192, %v201
    %v203 = vadd.f32 %v199, %v202
    %vm204 = vcmask 516096
    %205 = vst.msk [vmem:[#allocation15] sm:$0x1] %vm204, %v203
    %s206 = sld [smem:[#allocation11 + $0x1]]
    %v207 = vstv %s206
    %v208 = vmul.f32 %v184, %v207
    %s209 = sld [smem:[#allocation11 + $0x4]]
    %v210 = vstv %s209
    %v211 = vmul.f32 %v188, %v210
    %v212 = vadd.f32 %v208, %v211
    %s213 = sld [smem:[#allocation11 + $0x7]]
    %v214 = vstv %s213
    %v215 = vmul.f32 %v192, %v214
    %v216 = vadd.f32 %v212, %v215
    %217 = vst.msk [vmem:[#allocation15 + $0x1] sm:$0x1] %vm204, %v216
    %s218 = sld [smem:[#allocation11 + $0x2]]
    %v219 = vstv %s218
    %v220 = vmul.f32 %v184, %v219
    %s221 = sld [smem:[#allocation11 + $0x5]]
    %v222 = vstv %s221
    %v223 = vmul.f32 %v188, %v222
    %v224 = vadd.f32 %v220, %v223
    %s225 = sld [smem:[#allocation11 + $0x8]]
    %v226 = vstv %s225
    %v227 = vmul.f32 %v192, %v226
    %v228 = vadd.f32 %v224, %v227
    %229 = vst.msk [vmem:[#allocation15 + $0x2] sm:$0x1] %vm204, %v228
    %v230 = vld [vmem:[#allocation6] sm:$0x1]
    %s231 = sld [smem:[#allocation12 + $0x3]]
    %v232 = vstv %s231
    %v233 = vsub.f32 %v230, %v232
    %v234 = vld [vmem:[#allocation6 + $0x1] sm:$0x1]
    %s235 = sld [smem:[#allocation12 + $0x4]]
    %v236 = vstv %s235
    %v237 = vsub.f32 %v234, %v236
    %v238 = vld [vmem:[#allocation6 + $0x2] sm:$0x1]
    %s239 = sld [smem:[#allocation12 + $0x5]]
    %v240 = vstv %s239
    %v241 = vsub.f32 %v238, %v240
    %s242 = sld [smem:[#allocation11 + $0x9]]
    %v243 = vstv %s242
    %v244 = vmul.f32 %v233, %v243
    %s245 = sld [smem:[#allocation11 + $0xc]]
    %v246 = vstv %s245
    %v247 = vmul.f32 %v237, %v246
    %v248 = vadd.f32 %v244, %v247
    %s249 = sld [smem:[#allocation11 + $0xf]]
    %v250 = vstv %s249
    %v251 = vmul.f32 %v241, %v250
    %v252 = vadd.f32 %v248, %v251
    %253 = vst.msk [vmem:[#allocation15 + $0x3] sm:$0x1] %vm204, %v252
    %s254 = sld [smem:[#allocation11 + $0xa]]
    %v255 = vstv %s254
    %v256 = vmul.f32 %v233, %v255
    %s257 = sld [smem:[#allocation11 + $0xd]]
    %v258 = vstv %s257
    %v259 = vmul.f32 %v237, %v258
    %v260 = vadd.f32 %v256, %v259
    %s261 = sld [smem:[#allocation11 + $0x10]]
    %v262 = vstv %s261
    %v263 = vmul.f32 %v241, %v262
    %v264 = vadd.f32 %v260, %v263
    %265 = vst.msk [vmem:[#allocation15 + $0x4] sm:$0x1] %vm204, %v264
    %s266 = sld [smem:[#allocation11 + $0xb]]
    %v267 = vstv %s266
    %v268 = vmul.f32 %v233, %v267
    %s269 = sld [smem:[#allocation11 + $0xe]]
    %v270 = vstv %s269
    %v271 = vmul.f32 %v237, %v270
    %v272 = vadd.f32 %v268, %v271
    %s273 = sld [smem:[#allocation11 + $0x11]]
    %v274 = vstv %s273
    %v275 = vmul.f32 %v241, %v274
    %v276 = vadd.f32 %v272, %v275
    %277 = vst.msk [vmem:[#allocation15 + $0x5] sm:$0x1] %vm204, %v276
    %v278 = vld [vmem:[#allocation8] sm:$0x3f]
    %v279 = vmul.f32 %v180, %v278
    %v280 = vld [vmem:[%s3] sm:$0x3f]
    %v281 = vsub.f32 %v279, %v280
    %v282 = vld [vmem:[#allocation9] sm:$0x3f]
    %v283 = vmul.f32 %v180, %v282
    %v284 = vld [vmem:[%s5] sm:$0x3f]
    %v285 = vsub.f32 %v283, %v284
    %v286 = vmul.f32 %v281, %v281
    %v287 = vmul.f32 %v285, %v285
    %v288 = vadd.f32 %v286, %v287
    %vm289 = vcmask 1045504
    %v290 = vsel %vm289, %v288, 0.0
    %v291 = vrot.slane %v290, 4
    %v292 = vadd.f32 %v290, %v291
    %v293 = vrot.slane %v292, 2
    %v294 = vadd.f32 %v292, %v293
    %v295 = vrot.slane %v294, 1
    %v296 = vadd.f32 %v294, %v295
    %297 = vadd.xlane.f32.xlu0 %v296
    %v298 = vpop.xlane.xlu0 %297
    %v299 = vmul.f32 %v298, 0.5
    %vm300 = vcmask 0
    %301 = vst.msk [vmem:[#allocation14] sm:$0x1] %vm300, %v299
    // Predicated region
    $region58: #{tpu_custom_call.1} parent=1 // pred_check
      _
    $region59: #{tpu_custom_call.1} parent=1 // pred_check_branch
      %303 = sbr.rel (0) target = $region61
    $region60: #{tpu_custom_call.1} parent=1 // pred_region
      %s305 = ssub.s32 16, 16
      %306 = vsyncadd [#allocation4], %s305
      %s308 = sshll.u32 [#allocation14], 4
      %s309 = int_to_ptr.vmem [resolvable:$true] %s308
      %311 = dma.vmem_to_hbm [thread:$0]  %s309, 16, %s8, [#allocation4]
    $region61: #{tpu_custom_call.1} parent=1 // pred_fallthru
      _
    // Predicated region
    $region62: #{tpu_custom_call.1} parent=1 // pred_check
      _
    $region63: #{tpu_custom_call.1} parent=1 // pred_check_branch
      %313 = sbr.rel (0) target = $region65
    $region64: #{tpu_custom_call.1} parent=1 // pred_region
      %s315 = ssub.s32 128, 128
      %316 = vsyncadd [#allocation16], %s315
      %s318 = sshll.u32 [#allocation15], 4
      %s319 = int_to_ptr.vmem [resolvable:$true] %s318
      %321 = dma.vmem_to_hbm [thread:$0]  %s319, 128, %s9, [#allocation16]
    $region65: #{tpu_custom_call.1} parent=1 // pred_fallthru
      _
    // Predicated region
    $region66: #{tpu_custom_call.1} parent=1 // pred_check
      _
    $region67: #{tpu_custom_call.1} parent=1 // pred_check_branch
      %323 = sbr.rel (0) target = $region69
    $region68: #{tpu_custom_call.1} parent=1 // pred_region
      %324 = dma.done [#allocation4], 16
    $region69: #{tpu_custom_call.1} parent=1 // pred_fallthru
      _
    // Predicated region
    $region70: #{tpu_custom_call.1} parent=1 // pred_check
      _
    $region71: #{tpu_custom_call.1} parent=1 // pred_check_branch
      %326 = sbr.rel (0) target = $region73
    $region72: #{tpu_custom_call.1} parent=1 // pred_region
      %327 = dma.done [#allocation16], 128
    $region73: #{tpu_custom_call.1} parent=1 // pred_fallthru
      _
    %328 = vsyncpa [#allocation3], 1
    %329 = vsyncpa [#allocation7], 1
    %330 = vsyncpa [#allocation10], 1
    %331 = vsyncpa [#allocation4], 1
    %332 = vsyncpa [#allocation16], 1
    %333 = vsyncpa [#allocation5], 1
    %334 = vsyncpa [#allocation13], 1

</llo_original>
